<compile_context>
chip_gen: v5e
topology: v5e:2x2
jax: 0.10.0
libtpu: 0.0.40
codegen_flags: <defaults>
</compile_context>

<pallas_src>
import functools

import jax
import jax.numpy as jnp
from jax.experimental import pallas as pl
from jax.experimental.pallas import tpu as pltpu

# Row indices inside the packed "small" parameter buffer (must match the wrapper).
_R_BVH, _R_BWH, _R_WV, _R_LNW, _R_LNB, _R_BG = range(6)


def _pointer_kernel(hr_flat_ref,   # (B*S, C)  bf16
                    mask_ref,      # (B, S)    f32
                    h0_ref,        # (B, H)    f32
                    w_vh_ref,      # (C, H)    bf16 : vh.weight.T
                    w_ih_ref,      # (C, 4H)   bf16 : lstm weight_ih.T (gate order i,f,g,o)
                    w_hrec_ref,    # (H, 5H)   bf16 : [wh.weight.T | lstm weight_hh.T]
                    small_ref,     # (8, >=128) f32 : packed biases / LN params / v row
                    out_ref,       # (2*B, S)  f32
                    *, use_bf16_tanh):
    B, S = mask_ref.shape
    C = hr_flat_ref.shape[-1]
    H = h0_ref.shape[-1]

    # ---- hoisted, loop-invariant values --------------------------------------------------
    mask0 = mask_ref[...] == 0.0                      # (B, S) True where padding
    h = h0_ref[...]                                   # (B, H)
    c = h0_ref[...]                                   # module uses (h0, h0) as initial LSTM state

    bvh = small_ref[_R_BVH:_R_BVH + 1, :H]            # (1, H)
    bwh = small_ref[_R_BWH:_R_BWH + 1, :H]            # (1, H)
    wv  = small_ref[_R_WV:_R_WV + 1, :H]              # (1, H)   v.weight row
    lnw = small_ref[_R_LNW:_R_LNW + 1, :C]            # (1, C)
    lnb = small_ref[_R_LNB:_R_LNB + 1, :C]            # (1, C)
    bg  = small_ref[_R_BG:_R_BG + 1, :4 * H]          # (1, 4H)  bias_ih + bias_hh

    hr_flat = hr_flat_ref[...]                        # (B*S, C) bf16 — single copy of hr
    hr_bsc = hr_flat.reshape(B, S, C)                 # sublane-split view (S % 8 == 0)

    w_hrec = w_hrec_ref[...]                          # (H, 5H) bf16
    w_ih = w_ih_ref[...]                              # (C, 4H) bf16

    # vh = self.vh(hr): identical on both boundary steps -> one fused MXU matmul, f32 accum.
    vh = jnp.dot(hr_flat, w_vh_ref[...], preferred_element_type=jnp.float32)   # (B*S, H)
    vh = vh.reshape(B, S, H) + bvh                                             # (B, S, H)

    # Hoisted broadcasts (JAX does not CSE broadcast_in_dim across the unrolled loop).
    wv_b  = jnp.broadcast_to(wv.reshape(1, 1, H), (B, S, H))
    bwh_b = jnp.broadcast_to(bwh, (B, H))
    lnw_b = jnp.broadcast_to(lnw, (B, C))
    lnb_b = jnp.broadcast_to(lnb, (B, C))
    bg_b  = jnp.broadcast_to(bg, (B, 4 * H))
    neg_big = jnp.float32(-1e30)

    betas = []
    for t in range(2):                                # two boundary steps, statically unrolled
        # Recurrent matmul hoisted to the step top: one (B,H)@(H,5H) dot gives both wh(h)
        # and the Whh gate contribution, off the softmax->LayerNorm->gates serial chain.
        hh = jnp.dot(h.astype(jnp.bfloat16), w_hrec,
                     preferred_element_type=jnp.float32)                       # (B, 5H)
        wh = hh[:, :H] + bwh_b                                                  # (B, H)
        gates_h = hh[:, H:]                                                     # (B, 4H) = h @ Whh.T

        score = vh + wh[:, None, :]                                             # (B, S, H) f32
        if use_bf16_tanh:
            fk = jnp.tanh(score.astype(jnp.bfloat16))     # v6e/v7x: bf16 EUP (~2x tanh thru)
        else:
            fk = jnp.tanh(score)                          # v5e: f32-only VPU/EUP

        # vf = self.v(fk): width-1 output -> VPU multiply + lane reduce, f32 accumulation.
        # v.bias dropped: softmax is shift-invariant, so the result is identical.
        vf = jnp.sum(fk * wv_b, axis=-1)                                        # (B, S) f32

        # masked_fill(content_mask == 0, -inf) then softmax over S.
        vf = jnp.where(mask0, neg_big, vf)
        m = jnp.max(vf, axis=-1, keepdims=True)
        e = jnp.where(mask0, 0.0, jnp.exp(vf - m))
        denom = jnp.sum(e, axis=-1, keepdims=True)
        beta = e * (1.0 / denom)                          # exact divide; beta IS the output
        betas.append(beta)

        if t == 0:
            # The LSTM update after the last boundary step is never read (the module also
            # discards h[2]) -> only compute it for the first step.
            # h_beta = bmm(beta, hr): VPU multiply + sublane (XLU) reduce, beta stays f32.
            h_beta = jnp.sum(beta[:, :, None] * hr_bsc, axis=1)                 # (B, C) f32

            # LayerNorm(input_size), eps=1e-5 (is_bn=True).
            mu = jnp.mean(h_beta, axis=-1, keepdims=True)
            var = jnp.mean((h_beta - mu) ** 2, axis=-1, keepdims=True)
            h_beta = (h_beta - mu) * jax.lax.rsqrt(var + 1e-5) * lnw_b + lnb_b

            # LSTMCell (gate order i,f,g,o); the Whh contribution is already in gates_h.
            gates = jnp.dot(h_beta.astype(jnp.bfloat16), w_ih,
                            preferred_element_type=jnp.float32) + gates_h + bg_b  # (B, 4H)
            i_g = jax.nn.sigmoid(gates[:, 0 * H:1 * H])
            f_g = jax.nn.sigmoid(gates[:, 1 * H:2 * H])
            g_g = jnp.tanh(gates[:, 2 * H:3 * H])
            o_g = jax.nn.sigmoid(gates[:, 3 * H:4 * H])
            c = f_g * c + i_g * g_g
            h = o_g * jnp.tanh(c)

    # Single store of both boundary distributions (no per-step masked partial stores).
    out_ref[...] = jnp.concatenate(betas, axis=0)


@jax.jit
def uni_boundary_pointer(hr, content_mask, params, h0=None):
    """hr: (S, B, 2H) f32, content_mask: (B, S) f32 -> answer_range (2, B, S) f32."""
    S, B, C = hr.shape
    H = C // 2
    if h0 is None:
        h0 = jnp.zeros((B, H), jnp.float32)

    # bf16 elementwise tanh only where the chip has a bf16 VPU/EUP (v6e/v7x); f32 otherwise.
    try:
        kind = jax.devices()[0].device_kind.lower()
    except Exception:  # pragma: no cover
        kind = ""
    use_bf16_tanh = ("v6" in kind) or ("v7" in kind)

    # --- wrapper-side layout plumbing (free-ish XLA ops; keeps the kernel relayout-free) ---
    hr_flat = jnp.transpose(hr, (1, 0, 2)).reshape(B * S, C).astype(jnp.bfloat16)  # (B*S, C)
    mask = content_mask.astype(jnp.float32)
    h0 = h0.astype(jnp.float32)

    # Pre-transposed weights (contraction dim first) -> no in-kernel transposes.
    w_vh = params['wvh'].T.astype(jnp.bfloat16)                                    # (C, H)
    w_ih = params['wih'].T.astype(jnp.bfloat16)                                    # (C, 4H)
    w_hrec = jnp.concatenate([params['wwh'].T, params['whh'].T],
                             axis=1).astype(jnp.bfloat16)                          # (H, 5H)

    # Pack all the tiny 1-D parameters into one (8, >=128)-lane f32 tile (one DMA).
    lane_w = max(128, 4 * H, C)
    small = jnp.zeros((8, lane_w), jnp.float32)
    small = small.at[_R_BVH, :H].set(params['bvh'].reshape(-1))
    small = small.at[_R_BWH, :H].set(params['bwh'].reshape(-1))
    small = small.at[_R_WV, :H].set(params['wv'].reshape(-1))
    small = small.at[_R_LNW, :C].set(params['lnw'].reshape(-1))
    small = small.at[_R_LNB, :C].set(params['lnb'].reshape(-1))
    small = small.at[_R_BG, :4 * H].set((params['bih'] + params['bhh']).reshape(-1))

    inputs = [hr_flat, mask, h0, w_vh, w_ih, w_hrec, small]

    # TODO(synk): for production S/B, add an S-tiled grid (flash-style online softmax plus a
    # running h_beta accumulator), a batch-parallel axis in dimension_semantics, and a
    # vmem_limit_bytes bump; size the S tile against v7x's 64 MiB VMEM (half of v5e/v6e).
    out2d = pl.pallas_call(
        functools.partial(_pointer_kernel, use_bf16_tanh=use_bf16_tanh),
        out_shape=jax.ShapeDtypeStruct((2 * B, S), jnp.float32),
        in_specs=[pl.BlockSpec(memory_space=pltpu.MemorySpace.VMEM)] * len(inputs),
        out_specs=pl.BlockSpec(memory_space=pltpu.MemorySpace.VMEM),
    )(*inputs)

    return out2d.reshape(2, B, S)


def make_params(key, hidden_size):
    """Synthetic parameters matching the module's shapes (PyTorch layouts).
    Biases are nonzero purely to exercise the packed-bias plumbing; the module's own init
    zeroes them — forward semantics are identical either way."""
    H = hidden_size
    C = 2 * H                       # input_size = hidden_size * 2
    ks = jax.random.split(key, 12)
    s = 0.1
    return {
        'wvh': s * jax.random.normal(ks[0], (H, C), jnp.float32),       # vh.weight
        'bvh': 0.05 * jax.random.normal(ks[1], (1, H), jnp.float32),    # vh.bias
        'wwh': s * jax.random.normal(ks[2], (H, H), jnp.float32),       # wh.weight
        'bwh': 0.05 * jax.random.normal(ks[3], (1, H), jnp.float32),    # wh.bias
        'wv':  s * jax.random.normal(ks[4], (1, H), jnp.float32),       # v.weight
        'bv':  0.05 * jax.random.normal(ks[5], (1, 1), jnp.float32),    # v.bias
        'wih': s * jax.random.normal(ks[6], (4 * H, C), jnp.float32),   # lstm weight_ih
        'bih': 0.05 * jax.random.normal(ks[7], (1, 4 * H), jnp.float32),
        'whh': s * jax.random.normal(ks[8], (4 * H, H), jnp.float32),   # lstm weight_hh
        'bhh': 0.05 * jax.random.normal(ks[9], (1, 4 * H), jnp.float32),
        'lnw': 1.0 + 0.05 * jax.random.normal(ks[10], (1, C), jnp.float32),  # LayerNorm weight
        'lnb': 0.05 * jax.random.normal(ks[11], (1, C), jnp.float32),        # LayerNorm bias
    }


def reference(hr, content_mask, params, h0):
    """Pure-JAX f32 reference of the same forward pass (mode='LSTM', is_bn=True)."""
    S, B, C = hr.shape
    H = C // 2
    mask0 = content_mask == 0.0
    h, c = h0, h0
    vh = jnp.einsum('sbc,hc->sbh', hr, params['wvh']) + params['bvh']
    outs = []
    for _ in range(2):
        wh = h @ params['wwh'].T + params['bwh']
        fk = jnp.tanh(vh + wh[None])
        vf = (jnp.einsum('sbh,oh->sbo', fk, params['wv']) + params['bv'])[:, :, 0].T
        vf = jnp.where(mask0, -1e30, vf)
        m = jnp.max(vf, axis=1, keepdims=True)
        e = jnp.where(mask0, 0.0, jnp.exp(vf - m))
        beta = e / jnp.sum(e, axis=1, keepdims=True)
        outs.append(beta)
        hb = jnp.einsum('bs,sbc->bc', beta, hr)
        mu = jnp.mean(hb, -1, keepdims=True)
        var = jnp.mean((hb - mu) ** 2, -1, keepdims=True)
        hb = (hb - mu) * jax.lax.rsqrt(var + 1e-5) * params['lnw'] + params['lnb']
        gates = hb @ params['wih'].T + params['bih'] + h @ params['whh'].T + params['bhh']
        i_g = jax.nn.sigmoid(gates[:, 0 * H:1 * H])
        f_g = jax.nn.sigmoid(gates[:, 1 * H:2 * H])
        g_g = jnp.tanh(gates[:, 2 * H:3 * H])
        o_g = jax.nn.sigmoid(gates[:, 3 * H:4 * H])
        c = f_g * c + i_g * g_g
        h = o_g * jnp.tanh(c)
    return jnp.stack(outs)


if __name__ == "__main__":
    key = jax.random.PRNGKey(0)
    k_hr, k_par = jax.random.split(key)

    seq_len, batch, hidden = 8, 2, 32
    hr = jax.random.normal(k_hr, (seq_len, batch, 2 * hidden), jnp.float32)

    # content_mask: 1 for valid tokens, 0 for padding (second example is shorter)
    lengths = jnp.array([8, 5])
    content_mask = (jnp.arange(seq_len)[None, :] < lengths[:, None]).astype(jnp.float32)

    params = make_params(k_par, hidden)
    h0 = jnp.zeros((batch, hidden), jnp.float32)

    answer_range = uni_boundary_pointer(hr, content_mask, params, h0)
    answer_range = jax.block_until_ready(answer_range)

    ref = reference(hr, content_mask, params, h0)
    assert answer_range.shape == (2, batch, seq_len)
    assert jnp.all(jnp.isfinite(answer_range))
    assert jnp.allclose(answer_range, ref, atol=2e-2, rtol=2e-2)

    print("KERNEL_OK")
</pallas_src>

<mosaic_0001>
module attributes {stable_mosaic.version = 11 : i64} {
  func.func @_pointer_kernel(%arg0: memref<16x64xbf16, #tpu.memory_space<vmem>>, %arg1: memref<2x8xf32, #tpu.memory_space<vmem>>, %arg2: memref<2x32xf32, #tpu.memory_space<vmem>>, %arg3: memref<64x32xbf16, #tpu.memory_space<vmem>>, %arg4: memref<64x128xbf16, #tpu.memory_space<vmem>>, %arg5: memref<32x160xbf16, #tpu.memory_space<vmem>>, %arg6: memref<8x128xf32, #tpu.memory_space<vmem>>, %arg7: memref<4x8xf32, #tpu.memory_space<vmem>>) attributes {dimension_semantics = [], scalar_prefetch = 0 : i64, scratch_operands = 0 : i64, tpu.core_type = #tpu.core_type<tc>} {
    %c0 = arith.constant 0 : index
    %c0_0 = arith.constant 0 : index
    %0 = vector.load %arg1[%c0, %c0_0] : memref<2x8xf32, #tpu.memory_space<vmem>>, vector<2x8xf32>
    %cst = arith.constant 0.000000e+00 : f32
    %1 = vector.broadcast %cst : f32 to vector<2x8xf32>
    %2 = arith.cmpf oeq, %0, %1 : vector<2x8xf32>
    %c0_1 = arith.constant 0 : index
    %c0_2 = arith.constant 0 : index
    %3 = vector.load %arg2[%c0_1, %c0_2] : memref<2x32xf32, #tpu.memory_space<vmem>>, vector<2x32xf32>
    %c0_3 = arith.constant 0 : index
    %c0_4 = arith.constant 0 : index
    %4 = vector.load %arg2[%c0_3, %c0_4] : memref<2x32xf32, #tpu.memory_space<vmem>>, vector<2x32xf32>
    %c0_5 = arith.constant 0 : index
    %c0_6 = arith.constant 0 : index
    %5 = vector.load %arg6[%c0_5, %c0_6] : memref<8x128xf32, #tpu.memory_space<vmem>>, vector<1x32xf32>
    %c1 = arith.constant 1 : index
    %c0_7 = arith.constant 0 : index
    %6 = vector.load %arg6[%c1, %c0_7] : memref<8x128xf32, #tpu.memory_space<vmem>>, vector<1x32xf32>
    %c2 = arith.constant 2 : index
    %c0_8 = arith.constant 0 : index
    %7 = vector.load %arg6[%c2, %c0_8] : memref<8x128xf32, #tpu.memory_space<vmem>>, vector<1x32xf32>
    %c3 = arith.constant 3 : index
    %c0_9 = arith.constant 0 : index
    %8 = vector.load %arg6[%c3, %c0_9] : memref<8x128xf32, #tpu.memory_space<vmem>>, vector<1x64xf32>
    %c4 = arith.constant 4 : index
    %c0_10 = arith.constant 0 : index
    %9 = vector.load %arg6[%c4, %c0_10] : memref<8x128xf32, #tpu.memory_space<vmem>>, vector<1x64xf32>
    %c5 = arith.constant 5 : index
    %c0_11 = arith.constant 0 : index
    %10 = vector.load %arg6[%c5, %c0_11] : memref<8x128xf32, #tpu.memory_space<vmem>>, vector<1x128xf32>
    %c0_12 = arith.constant 0 : index
    %c0_13 = arith.constant 0 : index
    %11 = vector.load %arg0[%c0_12, %c0_13] : memref<16x64xbf16, #tpu.memory_space<vmem>>, vector<16x64xbf16>
    %12 = vector.shape_cast %11 : vector<16x64xbf16> to vector<2x8x64xbf16>
    %c0_14 = arith.constant 0 : index
    %c0_15 = arith.constant 0 : index
    %13 = vector.load %arg5[%c0_14, %c0_15] : memref<32x160xbf16, #tpu.memory_space<vmem>>, vector<32x160xbf16>
    %c0_16 = arith.constant 0 : index
    %c0_17 = arith.constant 0 : index
    %14 = vector.load %arg4[%c0_16, %c0_17] : memref<64x128xbf16, #tpu.memory_space<vmem>>, vector<64x128xbf16>
    %c0_18 = arith.constant 0 : index
    %c0_19 = arith.constant 0 : index
    %15 = vector.load %arg3[%c0_18, %c0_19] : memref<64x32xbf16, #tpu.memory_space<vmem>>, vector<64x32xbf16>
    %cst_20 = arith.constant dense<0.000000e+00> : vector<16x32xf32>
    %16 = tpu.matmul %11, %15, %cst_20 {dimension_numbers = #tpu.dot_dimension_numbers<[1], [0], [0], [1], [0, 0, 1, 1], [], []>} : vector<16x64xbf16>, vector<64x32xbf16>, vector<16x32xf32> -> vector<16x32xf32>
    %17 = vector.shape_cast %16 : vector<16x32xf32> to vector<2x8x32xf32>
    %18 = vector.shape_cast %5 : vector<1x32xf32> to vector<1x1x32xf32>
    %19 = vector.broadcast %18 : vector<1x1x32xf32> to vector<2x8x32xf32>
    %20 = arith.addf %17, %19 : vector<2x8x32xf32>
    %21 = vector.shape_cast %7 : vector<1x32xf32> to vector<1x1x32xf32>
    %22 = vector.shape_cast %21 : vector<1x1x32xf32> to vector<1x1x32xf32>
    %23 = vector.broadcast %22 : vector<1x1x32xf32> to vector<2x8x32xf32>
    %24 = vector.shape_cast %6 : vector<1x32xf32> to vector<1x32xf32>
    %25 = vector.broadcast %24 : vector<1x32xf32> to vector<2x32xf32>
    %26 = vector.shape_cast %8 : vector<1x64xf32> to vector<1x64xf32>
    %27 = vector.broadcast %26 : vector<1x64xf32> to vector<2x64xf32>
    %28 = vector.shape_cast %9 : vector<1x64xf32> to vector<1x64xf32>
    %29 = vector.broadcast %28 : vector<1x64xf32> to vector<2x64xf32>
    %30 = vector.shape_cast %10 : vector<1x128xf32> to vector<1x128xf32>
    %31 = vector.broadcast %30 : vector<1x128xf32> to vector<2x128xf32>
    %32 = arith.truncf %3 : vector<2x32xf32> to vector<2x32xbf16>
    %cst_21 = arith.constant dense<0.000000e+00> : vector<2x160xf32>
    %33 = tpu.matmul %32, %13, %cst_21 {dimension_numbers = #tpu.dot_dimension_numbers<[1], [0], [0], [1], [0, 0, 1, 1], [], []>} : vector<2x32xbf16>, vector<32x160xbf16>, vector<2x160xf32> -> vector<2x160xf32>
    %34 = vector.extract_strided_slice %33 {offsets = [0, 0], sizes = [2, 32], strides = [1, 1]} : vector<2x160xf32> to vector<2x32xf32>
    %35 = arith.addf %34, %25 : vector<2x32xf32>
    %36 = vector.extract_strided_slice %33 {offsets = [0, 32], sizes = [2, 128], strides = [1, 1]} : vector<2x160xf32> to vector<2x128xf32>
    %37 = vector.shape_cast %35 : vector<2x32xf32> to vector<2x1x32xf32>
    %38 = vector.broadcast %37 : vector<2x1x32xf32> to vector<2x8x32xf32>
    %39 = arith.addf %20, %38 : vector<2x8x32xf32>
    %40 = math.tanh %39 : vector<2x8x32xf32>
    %41 = arith.mulf %40, %23 : vector<2x8x32xf32>
    %cst_22 = arith.constant dense<0.000000e+00> : vector<2x8xf32>
    %42 = vector.multi_reduction <add>, %41, %cst_22 [2] : vector<2x8x32xf32> to vector<2x8xf32>
    %cst_23 = arith.constant -1.000000e+30 : f32
    %43 = vector.broadcast %cst_23 : f32 to vector<2x8xf32>
    %44 = arith.select %2, %43, %42 : vector<2x8xi1>, vector<2x8xf32>
    %cst_24 = arith.constant dense<0xFF800000> : vector<2xf32>
    %45 = vector.multi_reduction <maximumf>, %44, %cst_24 [1] : vector<2x8xf32> to vector<2xf32>
    %46 = vector.shape_cast %45 : vector<2xf32> to vector<2x1xf32>
    %47 = vector.broadcast %46 : vector<2x1xf32> to vector<2x8xf32>
    %48 = arith.subf %44, %47 : vector<2x8xf32>
    %49 = math.exp %48 : vector<2x8xf32>
    %cst_25 = arith.constant 0.000000e+00 : f32
    %50 = vector.broadcast %cst_25 : f32 to vector<2x8xf32>
    %51 = arith.select %2, %50, %49 : vector<2x8xi1>, vector<2x8xf32>
    %cst_26 = arith.constant dense<0.000000e+00> : vector<2xf32>
    %52 = vector.multi_reduction <add>, %51, %cst_26 [1] : vector<2x8xf32> to vector<2xf32>
    %53 = vector.shape_cast %52 : vector<2xf32> to vector<2x1xf32>
    %cst_27 = arith.constant 1.000000e+00 : f32
    %54 = vector.broadcast %cst_27 : f32 to vector<2x1xf32>
    %55 = arith.divf %54, %53 : vector<2x1xf32>
    %56 = vector.broadcast %55 : vector<2x1xf32> to vector<2x8xf32>
    %57 = arith.mulf %51, %56 : vector<2x8xf32>
    %58 = vector.shape_cast %57 : vector<2x8xf32> to vector<2x8x1xf32>
    %59 = arith.extf %12 : vector<2x8x64xbf16> to vector<2x8x64xf32>
    %60 = vector.broadcast %58 : vector<2x8x1xf32> to vector<2x8x64xf32>
    %61 = arith.mulf %60, %59 : vector<2x8x64xf32>
    %cst_28 = arith.constant dense<0.000000e+00> : vector<2x64xf32>
    %62 = vector.multi_reduction <add>, %61, %cst_28 [1] : vector<2x8x64xf32> to vector<2x64xf32>
    %cst_29 = arith.constant dense<0.000000e+00> : vector<2xf32>
    %63 = vector.multi_reduction <add>, %62, %cst_29 [1] : vector<2x64xf32> to vector<2xf32>
    %64 = vector.shape_cast %63 : vector<2xf32> to vector<2x1xf32>
    %cst_30 = arith.constant 6.400000e+01 : f32
    %65 = vector.broadcast %cst_30 : f32 to vector<2x1xf32>
    %66 = arith.divf %64, %65 : vector<2x1xf32>
    %67 = vector.broadcast %66 : vector<2x1xf32> to vector<2x64xf32>
    %68 = arith.subf %62, %67 : vector<2x64xf32>
    %69 = arith.mulf %68, %68 : vector<2x64xf32>
    %cst_31 = arith.constant dense<0.000000e+00> : vector<2xf32>
    %70 = vector.multi_reduction <add>, %69, %cst_31 [1] : vector<2x64xf32> to vector<2xf32>
    %71 = vector.shape_cast %70 : vector<2xf32> to vector<2x1xf32>
    %cst_32 = arith.constant 6.400000e+01 : f32
    %72 = vector.broadcast %cst_32 : f32 to vector<2x1xf32>
    %73 = arith.divf %71, %72 : vector<2x1xf32>
    %74 = vector.broadcast %66 : vector<2x1xf32> to vector<2x64xf32>
    %75 = arith.subf %62, %74 : vector<2x64xf32>
    %cst_33 = arith.constant 9.99999974E-6 : f32
    %76 = vector.broadcast %cst_33 : f32 to vector<2x1xf32>
    %77 = arith.addf %73, %76 : vector<2x1xf32>
    %78 = math.rsqrt %77 : vector<2x1xf32>
    %79 = vector.broadcast %78 : vector<2x1xf32> to vector<2x64xf32>
    %80 = arith.mulf %75, %79 : vector<2x64xf32>
    %81 = arith.mulf %80, %27 : vector<2x64xf32>
    %82 = arith.addf %81, %29 : vector<2x64xf32>
    %83 = arith.truncf %82 : vector<2x64xf32> to vector<2x64xbf16>
    %cst_34 = arith.constant dense<0.000000e+00> : vector<2x128xf32>
    %84 = tpu.matmul %83, %14, %cst_34 {dimension_numbers = #tpu.dot_dimension_numbers<[1], [0], [0], [1], [0, 0, 1, 1], [], []>} : vector<2x64xbf16>, vector<64x128xbf16>, vector<2x128xf32> -> vector<2x128xf32>
    %85 = arith.addf %84, %36 : vector<2x128xf32>
    %86 = arith.addf %85, %31 : vector<2x128xf32>
    %87 = vector.extract_strided_slice %86 {offsets = [0, 0], sizes = [2, 32], strides = [1, 1]} : vector<2x128xf32> to vector<2x32xf32>
    %88 = arith.negf %87 : vector<2x32xf32>
    %89 = math.exp %88 : vector<2x32xf32>
    %cst_35 = arith.constant 1.000000e+00 : f32
    %90 = vector.broadcast %cst_35 : f32 to vector<2x32xf32>
    %91 = arith.addf %90, %89 : vector<2x32xf32>
    %92 = arith.divf %90, %91 : vector<2x32xf32>
    %93 = vector.extract_strided_slice %86 {offsets = [0, 32], sizes = [2, 32], strides = [1, 1]} : vector<2x128xf32> to vector<2x32xf32>
    %94 = arith.negf %93 : vector<2x32xf32>
    %95 = math.exp %94 : vector<2x32xf32>
    %cst_36 = arith.constant 1.000000e+00 : f32
    %96 = vector.broadcast %cst_36 : f32 to vector<2x32xf32>
    %97 = arith.addf %96, %95 : vector<2x32xf32>
    %98 = arith.divf %96, %97 : vector<2x32xf32>
    %99 = vector.extract_strided_slice %86 {offsets = [0, 64], sizes = [2, 32], strides = [1, 1]} : vector<2x128xf32> to vector<2x32xf32>
    %100 = math.tanh %99 : vector<2x32xf32>
    %101 = vector.extract_strided_slice %86 {offsets = [0, 96], sizes = [2, 32], strides = [1, 1]} : vector<2x128xf32> to vector<2x32xf32>
    %102 = arith.negf %101 : vector<2x32xf32>
    %103 = math.exp %102 : vector<2x32xf32>
    %cst_37 = arith.constant 1.000000e+00 : f32
    %104 = vector.broadcast %cst_37 : f32 to vector<2x32xf32>
    %105 = arith.addf %104, %103 : vector<2x32xf32>
    %106 = arith.divf %104, %105 : vector<2x32xf32>
    %107 = arith.mulf %98, %4 : vector<2x32xf32>
    %108 = arith.mulf %92, %100 : vector<2x32xf32>
    %109 = arith.addf %107, %108 : vector<2x32xf32>
    %110 = math.tanh %109 : vector<2x32xf32>
    %111 = arith.mulf %106, %110 : vector<2x32xf32>
    %112 = arith.truncf %111 : vector<2x32xf32> to vector<2x32xbf16>
    %cst_38 = arith.constant dense<0.000000e+00> : vector<2x160xf32>
    %113 = tpu.matmul %112, %13, %cst_38 {dimension_numbers = #tpu.dot_dimension_numbers<[1], [0], [0], [1], [0, 0, 1, 1], [], []>} : vector<2x32xbf16>, vector<32x160xbf16>, vector<2x160xf32> -> vector<2x160xf32>
    %114 = vector.extract_strided_slice %113 {offsets = [0, 0], sizes = [2, 32], strides = [1, 1]} : vector<2x160xf32> to vector<2x32xf32>
    %115 = arith.addf %114, %25 : vector<2x32xf32>
    %116 = vector.shape_cast %115 : vector<2x32xf32> to vector<2x1x32xf32>
    %117 = vector.broadcast %116 : vector<2x1x32xf32> to vector<2x8x32xf32>
    %118 = arith.addf %20, %117 : vector<2x8x32xf32>
    %119 = math.tanh %118 : vector<2x8x32xf32>
    %120 = arith.mulf %119, %23 : vector<2x8x32xf32>
    %cst_39 = arith.constant dense<0.000000e+00> : vector<2x8xf32>
    %121 = vector.multi_reduction <add>, %120, %cst_39 [2] : vector<2x8x32xf32> to vector<2x8xf32>
    %cst_40 = arith.constant -1.000000e+30 : f32
    %122 = vector.broadcast %cst_40 : f32 to vector<2x8xf32>
    %123 = arith.select %2, %122, %121 : vector<2x8xi1>, vector<2x8xf32>
    %cst_41 = arith.constant dense<0xFF800000> : vector<2xf32>
    %124 = vector.multi_reduction <maximumf>, %123, %cst_41 [1] : vector<2x8xf32> to vector<2xf32>
    %125 = vector.shape_cast %124 : vector<2xf32> to vector<2x1xf32>
    %126 = vector.broadcast %125 : vector<2x1xf32> to vector<2x8xf32>
    %127 = arith.subf %123, %126 : vector<2x8xf32>
    %128 = math.exp %127 : vector<2x8xf32>
    %cst_42 = arith.constant 0.000000e+00 : f32
    %129 = vector.broadcast %cst_42 : f32 to vector<2x8xf32>
    %130 = arith.select %2, %129, %128 : vector<2x8xi1>, vector<2x8xf32>
    %cst_43 = arith.constant dense<0.000000e+00> : vector<2xf32>
    %131 = vector.multi_reduction <add>, %130, %cst_43 [1] : vector<2x8xf32> to vector<2xf32>
    %132 = vector.shape_cast %131 : vector<2xf32> to vector<2x1xf32>
    %cst_44 = arith.constant 1.000000e+00 : f32
    %133 = vector.broadcast %cst_44 : f32 to vector<2x1xf32>
    %134 = arith.divf %133, %132 : vector<2x1xf32>
    %135 = vector.broadcast %134 : vector<2x1xf32> to vector<2x8xf32>
    %136 = arith.mulf %130, %135 : vector<2x8xf32>
    %137 = tpu.concatenate %57, %136 in 0 : vector<2x8xf32>, vector<2x8xf32> -> vector<4x8xf32>
    %c0_45 = arith.constant 0 : index
    %c0_46 = arith.constant 0 : index
    %138 = vector.load %arg7[%c0_45, %c0_46] : memref<4x8xf32, #tpu.memory_space<vmem>>, vector<4x8xf32>
    tpu.vector_store %arg7[%c0_45, %c0_46], %137 {strides = array<i32>} : memref<4x8xf32, #tpu.memory_space<vmem>>, vector<4x8xf32>,
    return
  }
}

</mosaic_0001>

<llo_original>
// kernel: uni_boundary_pointer.1
$region0: #{uni_boundary_pointer.1}
  #allocation0 [shape = 'u32[]', space=smem, size = 0x4, offset = 0x4, fixed_abs, tag = 'smem constant byte address 0x4 - core index']
  #allocation1 [shape = 'u32[72,128]{1,0:T(1,128)}', space=vmem, size = 0x9000, scoped, tag = 'internal scratch']
  %s0 = inlined_call_operand.vmem [shape: bf16[16,64], index: 0, kind: input, shape index: {}]
  %s1 = inlined_call_operand.vmem [shape: f32[2,8], index: 1, kind: input, shape index: {}]
  %s2 = inlined_call_operand.vmem [shape: f32[2,32], index: 2, kind: input, shape index: {}]
  %s3 = inlined_call_operand.vmem [shape: bf16[64,32], index: 3, kind: input, shape index: {}]
  %s4 = inlined_call_operand.vmem [shape: bf16[64,128], index: 4, kind: input, shape index: {}]
  %s5 = inlined_call_operand.vmem [shape: bf16[32,160], index: 5, kind: input, shape index: {}]
  %s6 = inlined_call_operand.vmem [shape: f32[8,128], index: 6, kind: input, shape index: {}]
  %s7 = inlined_call_operand.hbm [shape: f32[4,8], index: 7, kind: output, shape index: {}]
  %s8 = sld [smem:[#allocation0]]
  $region38: #{uni_boundary_pointer.1} parent=0
    _
  %s10 = ssub.s32 1, %s8
  %s11 = scalar_select 0, %s10, %s8
  $region1: #{uni_boundary_pointer.1} parent=0
    #allocation2 [shape = 'u8[2048]{0}', space=vmem, size = 0x800, scoped, tag = 'output window, operand 0, single buffered']
    #allocation3 [shape = 's32[1]{0}', space=sflag, size = 0x4, scoped, tag = 'scoped memory for uni_boundary_pointer.1']
    %12 = vsyncpa [#allocation3], 0
    // Predicated region
    $region2: #{uni_boundary_pointer.1} parent=1 // pred_check
      _
    $region3: #{uni_boundary_pointer.1} parent=1 // pred_check_branch
      %14 = sbr.rel (0) target = $region5
    $region4: #{uni_boundary_pointer.1} parent=1 // pred_region
      _
    $region5: #{uni_boundary_pointer.1} parent=1 // pred_fallthru
      _
    // Predicated region
    $region6: #{uni_boundary_pointer.1} parent=1 // pred_check
      _
    $region7: #{uni_boundary_pointer.1} parent=1 // pred_check_branch
      %16 = sbr.rel (0) target = $region9
    $region8: #{uni_boundary_pointer.1} parent=1 // pred_region
      _
    $region9: #{uni_boundary_pointer.1} parent=1 // pred_fallthru
      _
    // Predicated region
    $region10: #{uni_boundary_pointer.1} parent=1 // pred_check
      _
    $region11: #{uni_boundary_pointer.1} parent=1 // pred_check_branch
      %18 = sbr.rel (0) target = $region13
    $region12: #{uni_boundary_pointer.1} parent=1 // pred_region
      _
    $region13: #{uni_boundary_pointer.1} parent=1 // pred_fallthru
      _
    // Predicated region
    $region14: #{uni_boundary_pointer.1} parent=1 // pred_check
      _
    $region15: #{uni_boundary_pointer.1} parent=1 // pred_check_branch
      %20 = sbr.rel (0) target = $region17
    $region16: #{uni_boundary_pointer.1} parent=1 // pred_region
      _
    $region17: #{uni_boundary_pointer.1} parent=1 // pred_fallthru
      _
    // Predicated region
    $region18: #{uni_boundary_pointer.1} parent=1 // pred_check
      _
    $region19: #{uni_boundary_pointer.1} parent=1 // pred_check_branch
      %22 = sbr.rel (0) target = $region21
    $region20: #{uni_boundary_pointer.1} parent=1 // pred_region
      _
    $region21: #{uni_boundary_pointer.1} parent=1 // pred_fallthru
      _
    // Predicated region
    $region22: #{uni_boundary_pointer.1} parent=1 // pred_check
      _
    $region23: #{uni_boundary_pointer.1} parent=1 // pred_check_branch
      %24 = sbr.rel (0) target = $region25
    $region24: #{uni_boundary_pointer.1} parent=1 // pred_region
      _
    $region25: #{uni_boundary_pointer.1} parent=1 // pred_fallthru
      _
    // Predicated region
    $region26: #{uni_boundary_pointer.1} parent=1 // pred_check
      _
    $region27: #{uni_boundary_pointer.1} parent=1 // pred_check_branch
      %26 = sbr.rel (0) target = $region29
    $region28: #{uni_boundary_pointer.1} parent=1 // pred_region
      _
    $region29: #{uni_boundary_pointer.1} parent=1 // pred_fallthru
      _
    %v28 = vld [vmem:[%s1] sm:$0x3]
    %vm29 = vcmp.eq.f32.partialorder %v28, 0.0
    %v30 = vld [vmem:[%s2] sm:$0x3]
    %v31 = vld [vmem:[%s6] sm:$0x1]
    %v32 = vld [vmem:[%s6 + $0x1] sm:$0x1]
    %v33 = vld [vmem:[%s6 + $0x2] sm:$0x1]
    %v34 = vld [vmem:[%s6 + $0x3] sm:$0x1]
    %v35 = vld [vmem:[%s6 + $0x4] sm:$0x1]
    %v36 = vld [vmem:[%s6 + $0x5] sm:$0x1]
    %v37 = vld [vmem:[%s0] sm:$0xf]
    %v38 = vld [vmem:[%s0 + $0x4] sm:$0xf]
    %v39 = vld [vmem:[%s5] sm:$0xff]
    %v40 = vld [vmem:[%s5 + $0x8] sm:$0xff]
    %v41 = vld [vmem:[%s5 + $0x10] sm:$0xff]
    %v42 = vld [vmem:[%s5 + $0x18] sm:$0xff]
    %v43 = vld [vmem:[%s4] sm:$0xf]
    %v44 = vld [vmem:[%s4 + $0x4] sm:$0xf]
    %v45 = vld [vmem:[%s4 + $0x8] sm:$0xf]
    %v46 = vld [vmem:[%s4 + $0xc] sm:$0xf]
    %v47 = vld [vmem:[%s4 + $0x10] sm:$0xf]
    %v48 = vld [vmem:[%s4 + $0x14] sm:$0xf]
    %v49 = vld [vmem:[%s4 + $0x18] sm:$0xf]
    %v50 = vld [vmem:[%s4 + $0x1c] sm:$0xf]
    %v51 = vld [vmem:[%s3] sm:$0xf]
    %v52 = vld [vmem:[%s3 + $0x4] sm:$0xf]
    %v53 = vld [vmem:[%s3 + $0x8] sm:$0xf]
    %v54 = vld [vmem:[%s3 + $0xc] sm:$0xf]
    %v55 = vld [vmem:[%s3 + $0x10] sm:$0xf]
    %v56 = vld [vmem:[%s3 + $0x14] sm:$0xf]
    %v57 = vld [vmem:[%s3 + $0x18] sm:$0xf]
    %v58 = vld [vmem:[%s3 + $0x1c] sm:$0xf]
    %v61 = vunpack.c.l.b16 %v37
    %v62 = vunpack.c.l.b16 %v38
    %v63 = vpack.c.b16 %v62, %v61
    %v72 = vunpack.c.l.b16 %v51
    %v73 = vunpack.c.l.b16 %v52
    %v74 = vunpack.c.l.b16 %v53
    %v75 = vunpack.c.l.b16 %v54
    %v76 = vunpack.c.l.b16 %v55
    %v77 = vunpack.c.l.b16 %v56
    %v78 = vunpack.c.l.b16 %v57
    %v79 = vunpack.c.l.b16 %v58
    %v80 = vpack.c.b16 %v73, %v72
    %v81 = vpack.c.b16 %v75, %v74
    %v82 = vpack.c.b16 %v77, %v76
    %v83 = vpack.c.b16 %v79, %v78
    %vm88 = vcmask 523264
    %v90 = vsel %vm88, %v63, 0
    %92 = vmatpush.bf16.msra.mxu0 0
    %93 = vmatpush.bf16.msra.mxu0 0
    %94 = vmatpush.bf16.msra.mxu0 0
    %95 = vmatpush.bf16.msra.mxu0 0
    %96 = vmatpush.bf16.msra.mxu0 %v83
    %97 = vmatpush.bf16.msra.mxu0 %v82
    %98 = vmatpush.bf16.msra.mxu0 %v81
    %99 = vmatpush.bf16.msra.mxu0 %v80
    %100 = vmatmul.bf16.gmra.mxu0 %v90
    %v101 = vpop.f32.mrf.mxu0
    %v102 = vadd.f32 0.0, %v101
    %v103 = vpop.f32.mrf.mxu0
    %v104 = vadd.f32 0.0, %v103
    %105 = vdwg.mxu0
    %v106 = vperm.slane %v31, 0
    %v107 = vadd.f32 %v102, %v106
    %v108 = vadd.f32 %v104, %v106
    %v109 = vperm.slane %v33, 0
    %v110 = vperm.slane %v32, 0
    %v111 = vperm.slane %v34, 0
    %v112 = vperm.slane %v35, 0
    %v113 = vperm.slane %v36, 0
    %v114 = vpack.c.bf16 %v30, %v30
    %v119 = vunpack.c.l.b16 %v39
    %v120 = vunpack.c.h.b16 %v39
    %v121 = vunpack.c.l.b16 %v40
    %v122 = vunpack.c.h.b16 %v40
    %v123 = vunpack.c.l.b16 %v41
    %v124 = vunpack.c.h.b16 %v41
    %v125 = vunpack.c.l.b16 %v42
    %v126 = vunpack.c.h.b16 %v42
    %v127 = vpack.c.b16 %v121, %v119
    %v128 = vpack.c.b16 %v122, %v120
    %v129 = vpack.c.b16 %v125, %v123
    %v130 = vpack.c.b16 %v126, %v124
    %vm135 = vcmask 261120
    %v137 = vsel %vm135, %v114, 0
    %139 = vmatpush.bf16.msra.mxu0 0
    %140 = vmatpush.bf16.msra.mxu0 0
    %141 = vmatpush.bf16.msra.mxu0 0
    %142 = vmatpush.bf16.msra.mxu0 0
    %143 = vmatpush.bf16.msra.mxu0 0
    %144 = vmatpush.bf16.msra.mxu0 0
    %145 = vmatpush.bf16.msra.mxu0 %v129
    %146 = vmatpush.bf16.msra.mxu0 %v127
    %147 = vmatmul.bf16.gmra.mxu0 %v137
    %v148 = vpop.f32.mrf.mxu0
    %v149 = vadd.f32 0.0, %v148
    %v150 = vpop.f32.mrf.mxu0
    %151 = vdwg.mxu0
    %152 = vmatpush.bf16.msra.mxu0 0
    %153 = vmatpush.bf16.msra.mxu0 0
    %154 = vmatpush.bf16.msra.mxu0 0
    %155 = vmatpush.bf16.msra.mxu0 0
    %156 = vmatpush.bf16.msra.mxu0 0
    %157 = vmatpush.bf16.msra.mxu0 0
    %158 = vmatpush.bf16.msra.mxu0 %v130
    %159 = vmatpush.bf16.msra.mxu0 %v128
    %160 = vmatmul.bf16.gmra.mxu0 %v137
    %v161 = vpop.f32.mrf.mxu0
    %v162 = vadd.f32 0.0, %v161
    %v163 = vpop.f32.mrf.mxu0
    %164 = vdwg.mxu0
    %v165 = vadd.f32 %v149, %v110
    %v167 = vrot.slane %v165, 1
    %v168 = vperm.slane %v165, 0
    %v169 = vperm.slane %v167, 0
    %v172 = vadd.f32 %v107, %v168
    %v173 = vadd.f32 %v108, %v169
    %v174 = vtanh.pop %v172
    %v175 = vtanh.pop %v173
    %v176 = vmul.f32 %v174, %v109
    %v177 = vmul.f32 %v175, %v109
    %v178 = vsel %vm135, %v176, 0.0
    %179 = vadd.xlane.f32.xlu0 %v178
    %v180 = vpop.xlane.xlu0 %179
    %v181 = vsel %vm135, %v177, 0.0
    %182 = vadd.xlane.f32.xlu0 %v181
    %v183 = vpop.xlane.xlu0 %182
    %v186 = vlaneseq
    %v187 = vand.u32 %v186, 127
    %v188 = vperm.slane %v180, %v187
    %v189 = vperm.slane %v183, %v187
    %vm190 = vcmask 1041409
    %v191 = vsel %vm190, %v189, %v188
    %v193 = vsel %vm29, -1e+30, %v191
    %vm194 = vcmask 58368
    %v195 = vsel %vm194, %v193, -inf
    %196 = vmax.xlane.f32.xlu0 %v195
    %v197 = vpop.xlane.xlu0 %196
    %v198 = vsub.f32 %v193, %v197
    %v199 = vmul.f32 %v198, 1.442695
    %v200 = vpow.pop %v199
    %v201 = vsel %vm29, 0.0, %v200
    %v202 = vsel %vm194, %v201, 0.0
    %203 = vadd.xlane.f32.xlu0 %v202
    %v204 = vpop.xlane.xlu0 %203
    %v205 = vrcp.pop %v204
    %v206 = vmul.f32 %v204, %v205
    %v207 = vsub.f32 1.0, %v206
    %v208 = vmul.f32 %v205, %v207
    %v209 = vadd.f32 %v205, %v208
    %vm210 = vweird.f32 %v204
    %vm211 = vweird.f32 %v205
    %vm212 = vmor %vm210, %vm211
    %v213 = vsel %vm212, %v205, %v209
    %v214 = vand.u32 2147483647, %v204
    %vm215 = vcmp.eq.f32.partialorder %v214, 8.507059e+37
    %v216 = vand.u32 %v204, 2147483648
    %v217 = vor.u32 1.1754944e-38, %v216
    %v218 = vsel %vm215, %v217, %v213
    %v219 = vmul.f32 1.0, %v218
    %v220 = vmul.f32 %v201, %v219
    %v221 = vperm.slane %v220, 0
    %v222 = vlaneseq
    %v223 = vshrl.u32 %v222, 7
    %225 = vset.pattern.permute.xlu0 %v223
    %226 = vperm.xlu0 %225, %v221
    %v227 = vpop.permute.xlu0 %226
    %v228 = vperm.slane %v220, 1
    %v229 = vlaneseq
    %v230 = vshrl.u32 %v229, 7
    %232 = vset.pattern.permute.xlu0 %v230
    %233 = vperm.xlu0 %232, %v228
    %v234 = vpop.permute.xlu0 %233
    %v235 = vunpack.c.l.bf16 %v37
    %v236 = vunpack.c.l.bf16 %v38
    %v237 = vmul.f32 %v227, %v235
    %v238 = vmul.f32 %v234, %v236
    %v239 = vsel %vm88, %v237, 0.0
    %v240 = vrot.slane %v239, 4
    %v241 = vadd.f32 %v239, %v240
    %v242 = vrot.slane %v241, 2
    %v243 = vadd.f32 %v241, %v242
    %v244 = vrot.slane %v243, 1
    %v245 = vadd.f32 %v243, %v244
    %v246 = vsel %vm88, %v238, 0.0
    %v247 = vrot.slane %v246, 4
    %v248 = vadd.f32 %v246, %v247
    %v249 = vrot.slane %v248, 2
    %v250 = vadd.f32 %v248, %v249
    %v251 = vrot.slane %v250, 1
    %v252 = vadd.f32 %v250, %v251
    %v255 = vsel %vm190, %v252, %v245
    %vm257 = vcmask 517120
    %v258 = vsel %vm257, %v255, 0.0
    %259 = vadd.xlane.f32.xlu0 %v258
    %v260 = vpop.xlane.xlu0 %259
    %v261 = vrcp.pop 64.0
    %v262 = vmul.f32 64.0, %v261
    %v263 = vsub.f32 1.0, %v262
    %v264 = vmul.f32 %v261, %v263
    %v265 = vadd.f32 %v261, %v264
    %vm266 = vweird.f32 %v261
    %v267 = vsel %vm266, %v261, %v265
    %v268 = vmul.f32 %v260, %v267
    %v270 = vrot.slane %v268, 1
    %v273 = vsub.f32 %v245, %v268
    %v274 = vsub.f32 %v252, %v270
    %v275 = vmul.f32 %v273, %v273
    %v276 = vmul.f32 %v274, %v274
    %v279 = vrot.slane %v276, 7
    %v280 = vsel %vm190, %v279, %v275
    %v282 = vsel %vm257, %v280, 0.0
    %283 = vadd.xlane.f32.xlu0 %v282
    %v284 = vpop.xlane.xlu0 %283
    %v285 = vmul.f32 %v284, %v267
    %v286 = vadd.f32 %v285, 1e-05
    %v287 = vrsqrt.pop %v286
    %v288 = vmul.f32 %v287, %v286
    %v289 = vmul.f32 %v288, %v287
    %v290 = vmul.f32 0.5, %v289
    %v291 = vsub.f32 1.5, %v290
    %v292 = vmul.f32 %v287, %v291
    %vm293 = vweird.f32 %v286
    %vm294 = vweird.f32 %v287
    %vm295 = vmor %vm293, %vm294
    %v296 = vsel %vm295, %v287, %v292
    %v298 = vrot.slane %v296, 1
    %v301 = vmul.f32 %v273, %v296
    %v302 = vmul.f32 %v274, %v298
    %v303 = vmul.f32 %v301, %v111
    %v304 = vmul.f32 %v302, %v111
    %v305 = vadd.f32 %v303, %v112
    %v306 = vadd.f32 %v304, %v112
    %v307 = vpack.c.bf16 %v305, %v305
    %v308 = vpack.c.bf16 %v306, %v306
    %v311 = vunpack.c.l.b16 %v307
    %v312 = vunpack.c.l.b16 %v308
    %v313 = vrot.slane %v312, 7
    %v314 = vsel %vm190, %v313, %v311
    %v315 = vpack.c.b16 %v314, %v314
    %v324 = vunpack.c.l.b16 %v43
    %v325 = vunpack.c.l.b16 %v44
    %v326 = vunpack.c.l.b16 %v45
    %v327 = vunpack.c.l.b16 %v46
    %v328 = vunpack.c.l.b16 %v47
    %v329 = vunpack.c.l.b16 %v48
    %v330 = vunpack.c.l.b16 %v49
    %v331 = vunpack.c.l.b16 %v50
    %v332 = vpack.c.b16 %v325, %v324
    %v333 = vpack.c.b16 %v327, %v326
    %v334 = vpack.c.b16 %v329, %v328
    %v335 = vpack.c.b16 %v331, %v330
    %342 = vrot.lane.b32.xlu0 %v149, 96
    %v343 = vpop.permute.xlu0 %342
    %344 = vrot.lane.b32.xlu0 %v162, 96
    %v345 = vpop.permute.xlu0 %344
    %vm346 = vcmask 785408
    %v347 = vsel %vm346, %v343, %v345
    %v350 = vsel %vm88, %v315, 0
    %352 = vmatpush.bf16.msra.mxu0 0
    %353 = vmatpush.bf16.msra.mxu0 0
    %354 = vmatpush.bf16.msra.mxu0 0
    %355 = vmatpush.bf16.msra.mxu0 0
    %356 = vmatpush.bf16.msra.mxu0 %v335
    %357 = vmatpush.bf16.msra.mxu0 %v334
    %358 = vmatpush.bf16.msra.mxu0 %v333
    %359 = vmatpush.bf16.msra.mxu0 %v332
    %360 = vmatmul.bf16.gmra.mxu0 %v350
    %v361 = vpop.f32.mrf.mxu0
    %v362 = vadd.f32 %v347, %v361
    %v363 = vpop.f32.mrf.mxu0
    %364 = vdwg.mxu0
    %v365 = vadd.f32 %v362, %v113
    %v366 = vxor.u32 %v365, 2147483648
    %v367 = vmul.f32 %v366, 1.442695
    %v368 = vpow.pop %v367
    %v369 = vadd.f32 %v368, 1.0
    %v370 = vrcp.pop %v369
    %v371 = vmul.f32 %v369, %v370
    %v372 = vsub.f32 1.0, %v371
    %v373 = vmul.f32 %v370, %v372
    %v374 = vadd.f32 %v370, %v373
    %vm375 = vweird.f32 %v369
    %vm376 = vweird.f32 %v370
    %vm377 = vmor %vm375, %vm376
    %v378 = vsel %vm377, %v370, %v374
    %v379 = vand.u32 2147483647, %v369
    %vm380 = vcmp.eq.f32.partialorder %v379, 8.507059e+37
    %v381 = vand.u32 %v369, 2147483648
    %v382 = vor.u32 1.1754944e-38, %v381
    %v383 = vsel %vm380, %v382, %v378
    %v384 = vmul.f32 1.0, %v383
    %v385 = vtanh.pop %v365
    %387 = vrot.lane.b32.xlu0 %v30, 32
    %v388 = vpop.permute.xlu0 %387
    %v390 = vmul.f32 %v384, %v388
    %392 = vrot.lane.b32.xlu0 %v385, 64
    %v393 = vpop.permute.xlu0 %392
    %v395 = vmul.f32 %v384, %v393
    %397 = vrot.lane.b32.xlu0 %v395, 32
    %v398 = vpop.permute.xlu0 %397
    %v400 = vadd.f32 %v390, %v398
    %v401 = vtanh.pop %v400
    %403 = vrot.lane.b32.xlu0 %v401, 64
    %v404 = vpop.permute.xlu0 %403
    %v406 = vmul.f32 %v384, %v404
    %v407 = vpack.c.bf16 %v406, %v406
    %409 = vrot.lane.b32.xlu0 %v407, 32
    %v410 = vpop.permute.xlu0 %409
    %v412 = vsel %vm135, %v410, 0
    %414 = vmatpush.bf16.msra.mxu0 0
    %415 = vmatpush.bf16.msra.mxu0 0
    %416 = vmatpush.bf16.msra.mxu0 0
    %417 = vmatpush.bf16.msra.mxu0 0
    %418 = vmatpush.bf16.msra.mxu0 0
    %419 = vmatpush.bf16.msra.mxu0 0
    %420 = vmatpush.bf16.msra.mxu0 %v129
    %421 = vmatpush.bf16.msra.mxu0 %v127
    %422 = vmatmul.bf16.gmra.mxu0 %v412
    %v423 = vpop.f32.mrf.mxu0
    %v424 = vadd.f32 0.0, %v423
    %v425 = vpop.f32.mrf.mxu0
    %426 = vdwg.mxu0
    %v427 = vadd.f32 %v424, %v110
    %v429 = vrot.slane %v427, 1
    %v430 = vperm.slane %v427, 0
    %v431 = vperm.slane %v429, 0
    %v434 = vadd.f32 %v107, %v430
    %v435 = vadd.f32 %v108, %v431
    %v436 = vtanh.pop %v434
    %v437 = vtanh.pop %v435
    %v438 = vmul.f32 %v436, %v109
    %v439 = vmul.f32 %v437, %v109
    %v440 = vsel %vm135, %v438, 0.0
    %441 = vadd.xlane.f32.xlu0 %v440
    %v442 = vpop.xlane.xlu0 %441
    %v443 = vsel %vm135, %v439, 0.0
    %444 = vadd.xlane.f32.xlu0 %v443
    %v445 = vpop.xlane.xlu0 %444
    %v448 = vperm.slane %v442, %v187
    %v449 = vperm.slane %v445, %v187
    %v450 = vsel %vm190, %v449, %v448
    %v452 = vsel %vm29, -1e+30, %v450
    %v453 = vsel %vm194, %v452, -inf
    %454 = vmax.xlane.f32.xlu0 %v453
    %v455 = vpop.xlane.xlu0 %454
    %v456 = vsub.f32 %v452, %v455
    %v457 = vmul.f32 %v456, 1.442695
    %v458 = vpow.pop %v457
    %v459 = vsel %vm29, 0.0, %v458
    %v460 = vsel %vm194, %v459, 0.0
    %461 = vadd.xlane.f32.xlu0 %v460
    %v462 = vpop.xlane.xlu0 %461
    %v463 = vrcp.pop %v462
    %v464 = vmul.f32 %v462, %v463
    %v465 = vsub.f32 1.0, %v464
    %v466 = vmul.f32 %v463, %v465
    %v467 = vadd.f32 %v463, %v466
    %vm468 = vweird.f32 %v462
    %vm469 = vweird.f32 %v463
    %vm470 = vmor %vm468, %vm469
    %v471 = vsel %vm470, %v463, %v467
    %v472 = vand.u32 2147483647, %v462
    %vm473 = vcmp.eq.f32.partialorder %v472, 8.507059e+37
    %v474 = vand.u32 %v462, 2147483648
    %v475 = vor.u32 1.1754944e-38, %v474
    %v476 = vsel %vm473, %v475, %v471
    %v477 = vmul.f32 1.0, %v476
    %v478 = vmul.f32 %v459, %v477
    %v480 = vrot.slane %v478, 6
    %vm482 = vcmask 1041408
    %v483 = vsel %vm482, %v220, %v480
    %vm484 = vcmask 60416
    %485 = vst.msk [vmem:[#allocation2] sm:$0xf] %vm484, %v483
    // Predicated region
    $region30: #{uni_boundary_pointer.1} parent=1 // pred_check
      _
    $region31: #{uni_boundary_pointer.1} parent=1 // pred_check_branch
      %487 = sbr.rel (0) target = $region33
    $region32: #{uni_boundary_pointer.1} parent=1 // pred_region
      %489 = vsyncadd [#allocation3], 0
      %s491 = sshll.u32 [#allocation2], 4
      %s492 = int_to_ptr.vmem [resolvable:$true] %s491
      %s493 = sshll.u32 %s7, 4
      %s494 = int_to_ptr.hbm [resolvable:$true] %s493
      %496 = dma.vmem_to_hbm [thread:$0]  %s492, 64, %s494, [#allocation3]
    $region33: #{uni_boundary_pointer.1} parent=1 // pred_fallthru
      _
    // Predicated region
    $region34: #{uni_boundary_pointer.1} parent=1 // pred_check
      _
    $region35: #{uni_boundary_pointer.1} parent=1 // pred_check_branch
      %498 = sbr.rel (0) target = $region37
    $region36: #{uni_boundary_pointer.1} parent=1 // pred_region
      %500 = dma.done [#allocation3], 64
    $region37: #{uni_boundary_pointer.1} parent=1 // pred_fallthru
      _
    %501 = vsyncpa [#allocation3], 1

</llo_original>
